<compile_context>
chip_gen: v6e
topology: v6e:2x2x1
jax: 0.10.0
libtpu: 0.0.40
codegen_flags: <defaults>
</compile_context>

<pallas_src>
import jax
import jax.numpy as jnp
from jax.experimental import pallas as pl
from jax.experimental.pallas import tpu as pltpu

EPS = 1e-10
_LANE = 128
_SUBLANE = 8
# Conservative VMEM budget for streamed tiles + in-kernel temporaries (bytes).
# Fits v7x's 64 MiB per-TC VMEM; v5e/v6e have more headroom.
_TILE_VMEM_BUDGET = 28 * 1024 * 1024
_VMEM_LIMIT_BYTES = 64 * 1024 * 1024   # raise v5e's 16 MiB scoped default


def _round_up(n, m):
    return ((n + m - 1) // m) * m


def _make_nalu_kernel(num_layers, padded_out_dims):
    """Fused kernel for a fixed (static) layer stack."""
    # NOTE: static Python unroll is fine for shallow stacks (typical NALU).
    # For num_layers >~ 4 with uniform hidden dims a lax.fori_loop over a
    # stacked (L, d_in_pad, 2*d_out_pad) weight tensor would bound vreg live
    # ranges; not needed at these depths.

    def kernel(x_ref, *refs):
        y_ref = refs[-1]
        wg_refs = refs[:-1]

        h = x_ref[...].astype(jnp.float32)                  # (bb, d_in_pad)
        bb = h.shape[0]
        for i in range(num_layers):                         # statically unrolled
            wg = wg_refs[i][...]                            # (d_in_pad, 2*d_out_pad)
            d_out = padded_out_dims[i]

            # One MXU issue per layer: rows [0,bb) are h, rows [bb,2bb) are
            # log(|h|+eps).  Column split / row split are tile-aligned.
            log_h = jnp.log(jnp.abs(h) + EPS)
            lhs = jnp.concatenate([h, log_h], axis=0).astype(wg.dtype)
            res = jnp.dot(lhs, wg, preferred_element_type=jnp.float32)

            a = res[:bb, :d_out]                            # additive path
            g = jax.nn.sigmoid(res[:bb, d_out:])            # gate
            m = jnp.exp(res[bb:, :d_out])                   # multiplicative path
            h = g * a + (1.0 - g) * m                       # exact torch formula

        y_ref[...] = h.astype(y_ref.dtype)

    return kernel


def _choose_batch_tiling(batch, d_in_pad, out_pad, d_max_pad, weight_bytes):
    """VMEM-budget-aware batch tile; batch is padded to a tile multiple."""
    # Per-row f32 footprint: double-buffered input/output streams plus a
    # generous bound on in-kernel temporaries (h, log_h, 2x-row lhs,
    # (2bb, 2*d_out) dot result, blend temporaries).
    per_row_bytes = 4 * (2 * d_in_pad + 2 * out_pad + 12 * d_max_pad)
    avail = max(_TILE_VMEM_BUDGET - 2 * weight_bytes, _SUBLANE * per_row_bytes)
    cap = max(_SUBLANE, min(1024, avail // per_row_bytes))
    if batch >= cap:
        block_b = _SUBLANE
        for cand in (1024, 512, 256, 128, 64, 32, 16, 8):
            if cand <= cap:
                block_b = cand
                break
    else:
        block_b = _round_up(batch, _SUBLANE)
    padded_batch = _round_up(batch, block_b)
    return block_b, padded_batch


def nalu_forward(x, params, *, mxu_dtype=jnp.float32):
    """Fused NALU forward.

    params: tuple of (W_hat, M_hat, G) per layer, torch (out_dim, in_dim) layout.
    mxu_dtype: dtype streamed to the MXU (x tile + packed weights).  Use
      jnp.bfloat16 on v6e/v7x for the fast MXU path and halved DMA bytes; keep
      jnp.float32 when bit-accuracy vs the f32 reference matters.  Element-wise
      and transcendental math is always f32.
    """
    batch, in_dim = x.shape
    num_layers = len(params)
    out_dim = params[-1][0].shape[0]

    # ---- weight prep (hoisted: once per forward, fused by XLA under jit) ----
    weight_args = []
    padded_dims = []                     # (d_in_pad, d_out_pad) per layer
    for (w_hat, m_hat, g) in params:
        d_out_l, d_in_l = w_hat.shape
        d_in_pad = _round_up(d_in_l, _LANE)
        d_out_pad = _round_up(d_out_l, _LANE)
        w = (jnp.tanh(w_hat) * jax.nn.sigmoid(m_hat)).T.astype(jnp.float32)   # (d_in, d_out)
        g_t = g.T.astype(jnp.float32)
        # Zero-padded weight rows/cols make every padded input column (whatever
        # junk it holds, incl. log(eps)) contribute exactly 0 to the dots.
        w_p = jnp.zeros((d_in_pad, d_out_pad), jnp.float32).at[:d_in_l, :d_out_l].set(w)
        g_p = jnp.zeros((d_in_pad, d_out_pad), jnp.float32).at[:d_in_l, :d_out_l].set(g_t)
        wg = jnp.concatenate([w_p, g_p], axis=1).astype(mxu_dtype)            # (d_in_pad, 2*d_out_pad)
        weight_args.append(wg)
        padded_dims.append((d_in_pad, d_out_pad))

    d_in_pad0 = padded_dims[0][0]
    out_pad = padded_dims[-1][1]
    d_max_pad = max(max(di, do) for (di, do) in padded_dims)
    weight_bytes = sum(int(w.size) * w.dtype.itemsize for w in weight_args)

    block_b, padded_batch = _choose_batch_tiling(
        batch, d_in_pad0, out_pad, d_max_pad, weight_bytes)
    grid = (padded_batch // block_b,)

    # ---- pad + stream the input (padded rows/cols are sliced away below) ----
    x_p = jnp.zeros((padded_batch, d_in_pad0), mxu_dtype).at[:batch, :in_dim].set(
        x.astype(mxu_dtype))

    in_specs = [pl.BlockSpec((block_b, d_in_pad0), lambda i: (i, 0))]
    for wg in weight_args:
        # Full-array, constant-index -> VMEM-resident across all batch tiles.
        in_specs.append(pl.BlockSpec(wg.shape, lambda i: (0, 0)))

    # Advisory cost: transcendental-heavy (log + exp + sigmoid), not flop-heavy.
    flops = sum(8 * padded_batch * di * do for (di, do) in padded_dims)
    transcendentals = sum(padded_batch * (di + 2 * do) for (di, do) in padded_dims)
    bytes_accessed = (int(x_p.size) * x_p.dtype.itemsize + weight_bytes
                      + padded_batch * out_pad * 4)

    kernel = _make_nalu_kernel(num_layers, tuple(do for (_, do) in padded_dims))

    out_padded = pl.pallas_call(
        kernel,
        out_shape=jax.ShapeDtypeStruct((padded_batch, out_pad), jnp.float32),
        grid=grid,
        in_specs=in_specs,
        out_specs=pl.BlockSpec((block_b, out_pad), lambda i: (i, 0)),
        compiler_params=pltpu.CompilerParams(
            dimension_semantics=("parallel",),
            vmem_limit_bytes=_VMEM_LIMIT_BYTES,
        ),
        cost_estimate=pl.CostEstimate(
            flops=int(flops),
            transcendentals=int(transcendentals),
            bytes_accessed=int(bytes_accessed),
        ),
    )(x_p, *weight_args)

    return out_padded[:batch, :out_dim]


nalu_forward_jit = jax.jit(nalu_forward, static_argnames=("mxu_dtype",))


def init_nalu_params(key, num_layers, in_dim, hidden_dim, out_dim):
    """Deterministic parameter init (Kaiming-uniform-ish, 'Kai_uni' flavor)."""
    params = []
    for i in range(num_layers):
        d_in = hidden_dim if i > 0 else in_dim
        d_out = hidden_dim if i < num_layers - 1 else out_dim
        key, k1, k2, k3 = jax.random.split(key, 4)
        scale = 1.0 / jnp.sqrt(jnp.float32(d_in))
        w_hat = jax.random.uniform(k1, (d_out, d_in), jnp.float32, -scale, scale)
        m_hat = jax.random.uniform(k2, (d_out, d_in), jnp.float32, -scale, scale)
        g = jax.random.uniform(k3, (d_out, d_in), jnp.float32, -scale, scale)
        params.append((w_hat, m_hat, g))
    return tuple(params)


def _reference_forward(x, params):
    """Pure-JAX reference mirroring the PyTorch module exactly."""
    out = x
    for (w_hat, m_hat, g_w) in params:
        w = jnp.tanh(w_hat) * jax.nn.sigmoid(m_hat)
        a = out @ w.T
        g = jax.nn.sigmoid(out @ g_w.T)
        m = jnp.exp(jnp.log(jnp.abs(out) + EPS) @ w.T)
        out = g * a + (1.0 - g) * m
    return out


if __name__ == "__main__":
    key = jax.random.PRNGKey(0)
    k_x, k_p, k_b = jax.random.split(key, 3)

    num_layers = 2
    in_dim = 16
    hidden_dim = 32
    out_dim = 8
    params = init_nalu_params(k_p, num_layers, in_dim, hidden_dim, out_dim)

    # --- small test: single tile, tight tolerance (f32 MXU path) ---
    batch = 8
    x = jax.random.normal(k_x, (batch, in_dim), dtype=jnp.float32)
    y = jax.block_until_ready(nalu_forward_jit(x, params))
    y_ref = _reference_forward(x, params)
    assert y.shape == (batch, out_dim)
    assert jnp.allclose(y, y_ref, atol=1e-4, rtol=1e-4), "small-batch mismatch"

    # --- large test: exercises batch tiling, grid > 1 and remainder padding ---
    big_batch = 2500
    x_big = 1.0 + 0.1 * jax.random.normal(k_b, (big_batch, in_dim), dtype=jnp.float32)
    y_big = jax.block_until_ready(nalu_forward_jit(x_big, params))
    y_big_ref = _reference_forward(x_big, params)
    assert y_big.shape == (big_batch, out_dim)
    assert jnp.allclose(y_big, y_big_ref, atol=1e-3, rtol=1e-3), "tiled-batch mismatch"

    # --- bf16 MXU-input path (v6e/v7x option): smoke test, no bit comparison ---
    y_bf16 = jax.block_until_ready(
        nalu_forward_jit(x, params, mxu_dtype=jnp.bfloat16))
    assert y_bf16.shape == (batch, out_dim)
    assert bool(jnp.all(jnp.isfinite(y_bf16))), "bf16 path produced non-finite values"

    # TODO(synk): the torch module stashes the gate activations in self.g_store;
    # that side-effect is not returned here (forward output is unaffected).
    print("KERNEL_OK")
</pallas_src>

<mosaic_0001>
module attributes {stable_mosaic.version = 11 : i64} {
  func.func @kernel(%arg0: i32, %arg1: memref<8x128xf32, #tpu.memory_space<vmem>>, %arg2: memref<128x256xf32, #tpu.memory_space<vmem>>, %arg3: memref<128x256xf32, #tpu.memory_space<vmem>>, %arg4: memref<8x128xf32, #tpu.memory_space<vmem>>) attributes {dimension_semantics = [#tpu.dimension_semantics<parallel>], iteration_bounds = array<i64: 1>, scalar_prefetch = 0 : i64, scratch_operands = 0 : i64, tpu.core_type = #tpu.core_type<tc>, window_params = [{transform_indices = @transform_0, window_bounds = array<i64: 8, 128>}, {pipeline_mode = #tpu.pipeline_mode<synchronous>, transform_indices = @transform_1, window_bounds = array<i64: 128, 256>}, {pipeline_mode = #tpu.pipeline_mode<synchronous>, transform_indices = @transform_2, window_bounds = array<i64: 128, 256>}, {transform_indices = @transform_3, window_bounds = array<i64: 8, 128>}]} {
    %c0 = arith.constant 0 : index
    %c0_0 = arith.constant 0 : index
    %0 = vector.load %arg1[%c0, %c0_0] : memref<8x128xf32, #tpu.memory_space<vmem>>, vector<8x128xf32>
    %c0_1 = arith.constant 0 : index
    %c0_2 = arith.constant 0 : index
    %1 = vector.load %arg2[%c0_1, %c0_2] : memref<128x256xf32, #tpu.memory_space<vmem>>, vector<128x256xf32>
    %2 = math.absf %0 : vector<8x128xf32>
    %cst = arith.constant 1.000000e-10 : f32
    %3 = vector.broadcast %cst : f32 to vector<8x128xf32>
    %4 = arith.addf %2, %3 : vector<8x128xf32>
    %5 = math.log %4 : vector<8x128xf32>
    %6 = tpu.concatenate %0, %5 in 0 : vector<8x128xf32>, vector<8x128xf32> -> vector<16x128xf32>
    %cst_3 = arith.constant dense<0.000000e+00> : vector<16x256xf32>
    %7 = tpu.matmul %6, %1, %cst_3 {dimension_numbers = #tpu.dot_dimension_numbers<[1], [0], [0], [1], [0, 0, 1, 1], [], []>} : vector<16x128xf32>, vector<128x256xf32>, vector<16x256xf32> -> vector<16x256xf32>
    %8 = vector.extract_strided_slice %7 {offsets = [0, 0], sizes = [8, 128], strides = [1, 1]} : vector<16x256xf32> to vector<8x128xf32>
    %9 = vector.extract_strided_slice %7 {offsets = [0, 128], sizes = [8, 128], strides = [1, 1]} : vector<16x256xf32> to vector<8x128xf32>
    %10 = arith.negf %9 : vector<8x128xf32>
    %11 = math.exp %10 : vector<8x128xf32>
    %cst_4 = arith.constant 1.000000e+00 : f32
    %12 = vector.broadcast %cst_4 : f32 to vector<8x128xf32>
    %13 = arith.addf %12, %11 : vector<8x128xf32>
    %14 = arith.divf %12, %13 : vector<8x128xf32>
    %15 = vector.extract_strided_slice %7 {offsets = [8, 0], sizes = [8, 128], strides = [1, 1]} : vector<16x256xf32> to vector<8x128xf32>
    %16 = math.exp %15 : vector<8x128xf32>
    %17 = arith.mulf %14, %8 : vector<8x128xf32>
    %cst_5 = arith.constant 1.000000e+00 : f32
    %18 = vector.broadcast %cst_5 : f32 to vector<8x128xf32>
    %19 = arith.subf %18, %14 : vector<8x128xf32>
    %20 = arith.mulf %19, %16 : vector<8x128xf32>
    %21 = arith.addf %17, %20 : vector<8x128xf32>
    %c0_6 = arith.constant 0 : index
    %c0_7 = arith.constant 0 : index
    %22 = vector.load %arg3[%c0_6, %c0_7] : memref<128x256xf32, #tpu.memory_space<vmem>>, vector<128x256xf32>
    %23 = math.absf %21 : vector<8x128xf32>
    %cst_8 = arith.constant 1.000000e-10 : f32
    %24 = vector.broadcast %cst_8 : f32 to vector<8x128xf32>
    %25 = arith.addf %23, %24 : vector<8x128xf32>
    %26 = math.log %25 : vector<8x128xf32>
    %27 = tpu.concatenate %21, %26 in 0 : vector<8x128xf32>, vector<8x128xf32> -> vector<16x128xf32>
    %cst_9 = arith.constant dense<0.000000e+00> : vector<16x256xf32>
    %28 = tpu.matmul %27, %22, %cst_9 {dimension_numbers = #tpu.dot_dimension_numbers<[1], [0], [0], [1], [0, 0, 1, 1], [], []>} : vector<16x128xf32>, vector<128x256xf32>, vector<16x256xf32> -> vector<16x256xf32>
    %29 = vector.extract_strided_slice %28 {offsets = [0, 0], sizes = [8, 128], strides = [1, 1]} : vector<16x256xf32> to vector<8x128xf32>
    %30 = vector.extract_strided_slice %28 {offsets = [0, 128], sizes = [8, 128], strides = [1, 1]} : vector<16x256xf32> to vector<8x128xf32>
    %31 = arith.negf %30 : vector<8x128xf32>
    %32 = math.exp %31 : vector<8x128xf32>
    %cst_10 = arith.constant 1.000000e+00 : f32
    %33 = vector.broadcast %cst_10 : f32 to vector<8x128xf32>
    %34 = arith.addf %33, %32 : vector<8x128xf32>
    %35 = arith.divf %33, %34 : vector<8x128xf32>
    %36 = vector.extract_strided_slice %28 {offsets = [8, 0], sizes = [8, 128], strides = [1, 1]} : vector<16x256xf32> to vector<8x128xf32>
    %37 = math.exp %36 : vector<8x128xf32>
    %38 = arith.mulf %35, %29 : vector<8x128xf32>
    %cst_11 = arith.constant 1.000000e+00 : f32
    %39 = vector.broadcast %cst_11 : f32 to vector<8x128xf32>
    %40 = arith.subf %39, %35 : vector<8x128xf32>
    %41 = arith.mulf %40, %37 : vector<8x128xf32>
    %42 = arith.addf %38, %41 : vector<8x128xf32>
    %c0_12 = arith.constant 0 : index
    %c0_13 = arith.constant 0 : index
    %43 = vector.load %arg4[%c0_12, %c0_13] : memref<8x128xf32, #tpu.memory_space<vmem>>, vector<8x128xf32>
    tpu.vector_store %arg4[%c0_12, %c0_13], %42 {strides = array<i32>} : memref<8x128xf32, #tpu.memory_space<vmem>>, vector<8x128xf32>,
    return
  }
  func.func @transform_0(%arg0: i32) -> (i32, i32) {
    %c0_i32 = arith.constant 0 : i32
    %c0_i32_0 = arith.constant 0 : i32
    return %arg0, %c0_i32 : i32, i32
  }
  func.func @transform_1(%arg0: i32) -> (i32, i32) {
    %c0_i32 = arith.constant 0 : i32
    %c0_i32_0 = arith.constant 0 : i32
    %c0_i32_1 = arith.constant 0 : i32
    return %c0_i32, %c0_i32_0 : i32, i32
  }
  func.func @transform_2(%arg0: i32) -> (i32, i32) {
    %c0_i32 = arith.constant 0 : i32
    %c0_i32_0 = arith.constant 0 : i32
    %c0_i32_1 = arith.constant 0 : i32
    return %c0_i32, %c0_i32_0 : i32, i32
  }
  func.func @transform_3(%arg0: i32) -> (i32, i32) {
    %c0_i32 = arith.constant 0 : i32
    %c0_i32_0 = arith.constant 0 : i32
    return %arg0, %c0_i32 : i32, i32
  }
}

</mosaic_0001>

<llo_original>
// kernel: nalu_forward.1
$region0: #{nalu_forward.1}
  #allocation0 [shape = 'u32[]', space=smem, size = 0x4, offset = 0x4, fixed_abs, tag = 'smem constant byte address 0x4 - core index']
  #allocation1 [shape = 'u32[144,128]{1,0:T(1,128)}', space=vmem, size = 0x12000, scoped, tag = 'internal scratch']
  %s0 = inlined_call_operand.vmem [shape: f32[8,128], index: 0, kind: input, shape index: {}]
  %s1 = inlined_call_operand.vmem [shape: f32[128,256], index: 1, kind: input, shape index: {}]
  %s2 = inlined_call_operand.vmem [shape: f32[128,256], index: 2, kind: input, shape index: {}]
  %s3 = inlined_call_operand.hbm [shape: f32[8,128], index: 3, kind: output, shape index: {}]
  %s4 = sld [smem:[#allocation0]]
  $region22: #{nalu_forward.1} parent=0
    _
  %s6 = ssub.s32 1, %s4
  %s7 = scalar_select 0, %s6, %s4
  $region1: #{nalu_forward.1} parent=0
    #allocation2 [shape = 'u8[4096]{0}', space=vmem, size = 0x1000, scoped, tag = 'output window, operand 0, single buffered']
    #allocation3 [shape = 's32[1]{0}', space=sflag, size = 0x4, scoped, tag = 'scoped memory for nalu_forward.1']
    %8 = vsyncpa [#allocation3], 0
    // Predicated region
    $region2: #{nalu_forward.1} parent=1 // pred_check
      _
    $region3: #{nalu_forward.1} parent=1 // pred_check_branch
      %10 = sbr.rel (0) target = $region5
    $region4: #{nalu_forward.1} parent=1 // pred_region
      _
    $region5: #{nalu_forward.1} parent=1 // pred_fallthru
      _
    // Predicated region
    $region6: #{nalu_forward.1} parent=1 // pred_check
      _
    $region7: #{nalu_forward.1} parent=1 // pred_check_branch
      %12 = sbr.rel (0) target = $region9
    $region8: #{nalu_forward.1} parent=1 // pred_region
      _
    $region9: #{nalu_forward.1} parent=1 // pred_fallthru
      _
    // Predicated region
    $region10: #{nalu_forward.1} parent=1 // pred_check
      _
    $region11: #{nalu_forward.1} parent=1 // pred_check_branch
      %14 = sbr.rel (0) target = $region13
    $region12: #{nalu_forward.1} parent=1 // pred_region
      _
    $region13: #{nalu_forward.1} parent=1 // pred_fallthru
      _
    %v15 = vld [vmem:[%s0] sm:$0xff]
    %v16 = vld [vmem:[%s1] sm:$0xff]
    %v17 = vld [vmem:[%s1 + $0x8] sm:$0xff]
    %v18 = vld [vmem:[%s1 + $0x10] sm:$0xff]
    %v19 = vld [vmem:[%s1 + $0x18] sm:$0xff]
    %v20 = vld [vmem:[%s1 + $0x20] sm:$0xff]
    %v21 = vld [vmem:[%s1 + $0x28] sm:$0xff]
    %v22 = vld [vmem:[%s1 + $0x30] sm:$0xff]
    %v23 = vld [vmem:[%s1 + $0x38] sm:$0xff]
    %v24 = vld [vmem:[%s1 + $0x40] sm:$0xff]
    %v25 = vld [vmem:[%s1 + $0x48] sm:$0xff]
    %v26 = vld [vmem:[%s1 + $0x50] sm:$0xff]
    %v27 = vld [vmem:[%s1 + $0x58] sm:$0xff]
    %v28 = vld [vmem:[%s1 + $0x60] sm:$0xff]
    %v29 = vld [vmem:[%s1 + $0x68] sm:$0xff]
    %v30 = vld [vmem:[%s1 + $0x70] sm:$0xff]
    %v31 = vld [vmem:[%s1 + $0x78] sm:$0xff]
    %v32 = vld [vmem:[%s1 + $0x80] sm:$0xff]
    %v33 = vld [vmem:[%s1 + $0x88] sm:$0xff]
    %v34 = vld [vmem:[%s1 + $0x90] sm:$0xff]
    %v35 = vld [vmem:[%s1 + $0x98] sm:$0xff]
    %v36 = vld [vmem:[%s1 + $0xa0] sm:$0xff]
    %v37 = vld [vmem:[%s1 + $0xa8] sm:$0xff]
    %v38 = vld [vmem:[%s1 + $0xb0] sm:$0xff]
    %v39 = vld [vmem:[%s1 + $0xb8] sm:$0xff]
    %v40 = vld [vmem:[%s1 + $0xc0] sm:$0xff]
    %v41 = vld [vmem:[%s1 + $0xc8] sm:$0xff]
    %v42 = vld [vmem:[%s1 + $0xd0] sm:$0xff]
    %v43 = vld [vmem:[%s1 + $0xd8] sm:$0xff]
    %v44 = vld [vmem:[%s1 + $0xe0] sm:$0xff]
    %v45 = vld [vmem:[%s1 + $0xe8] sm:$0xff]
    %v46 = vld [vmem:[%s1 + $0xf0] sm:$0xff]
    %v47 = vld [vmem:[%s1 + $0xf8] sm:$0xff]
    %v48 = vand.u32 2147483647, %v15
    %v49 = vadd.f32 %v48, 1e-10
    %v50 = vlog2.pop %v49
    %v51 = vmul.f32 %v50, 0.6931472
    %52 = vmatprep.subr.mxu0 %v47
    %53 = vmatpush1.msra.mxu0 %v46
    %54 = vmatprep.subr.mxu0 %v45
    %55 = vmatpush1.msra.mxu0 %v44
    %56 = vmatprep.subr.mxu0 %v43
    %57 = vmatpush1.msra.mxu0 %v42
    %58 = vmatprep.subr.mxu0 %v41
    %59 = vmatpush1.msra.mxu0 %v40
    %60 = vmatprep.subr.mxu0 %v39
    %61 = vmatpush1.msra.mxu0 %v38
    %62 = vmatprep.subr.mxu0 %v37
    %63 = vmatpush1.msra.mxu0 %v36
    %64 = vmatprep.subr.mxu0 %v35
    %65 = vmatpush1.msra.mxu0 %v34
    %66 = vmatprep.subr.mxu0 %v33
    %67 = vmatpush1.msra.mxu0 %v32
    %68 = vmatprep.subr.mxu0 %v31
    %69 = vmatpush1.msra.mxu0 %v30
    %70 = vmatprep.subr.mxu0 %v29
    %71 = vmatpush1.msra.mxu0 %v28
    %72 = vmatprep.subr.mxu0 %v27
    %73 = vmatpush1.msra.mxu0 %v26
    %74 = vmatprep.subr.mxu0 %v25
    %75 = vmatpush1.msra.mxu0 %v24
    %76 = vmatprep.subr.mxu0 %v23
    %77 = vmatpush1.msra.mxu0 %v22
    %78 = vmatprep.subr.mxu0 %v21
    %79 = vmatpush1.msra.mxu0 %v20
    %80 = vmatprep.subr.mxu0 %v19
    %81 = vmatpush1.msra.mxu0 %v18
    %82 = vmatprep.subr.mxu0 %v17
    %83 = vmatpush1.msra.mxu0 %v16
    %84 = vmatprep.subr.mxu0 0.0
    %85 = vmatpush2.msra.mxu0 0.0
    %86 = vmatprep.subr.mxu0 0.0
    %87 = vmatpush2.msra.mxu0 0.0
    %88 = vmatprep.subr.mxu0 0.0
    %89 = vmatpush2.msra.mxu0 0.0
    %90 = vmatprep.subr.mxu0 0.0
    %91 = vmatpush2.msra.mxu0 0.0
    %92 = vmatprep.subr.mxu0 0.0
    %93 = vmatpush2.msra.mxu0 0.0
    %94 = vmatprep.subr.mxu0 0.0
    %95 = vmatpush2.msra.mxu0 0.0
    %96 = vmatprep.subr.mxu0 0.0
    %97 = vmatpush2.msra.mxu0 0.0
    %98 = vmatprep.subr.mxu0 0.0
    %99 = vmatpush2.msra.mxu0 0.0
    %100 = vmatprep.subr.mxu0 0.0
    %101 = vmatpush2.msra.mxu0 0.0
    %102 = vmatprep.subr.mxu0 0.0
    %103 = vmatpush2.msra.mxu0 0.0
    %104 = vmatprep.subr.mxu0 0.0
    %105 = vmatpush2.msra.mxu0 0.0
    %106 = vmatprep.subr.mxu0 0.0
    %107 = vmatpush2.msra.mxu0 0.0
    %108 = vmatprep.subr.mxu0 0.0
    %109 = vmatpush2.msra.mxu0 0.0
    %110 = vmatprep.subr.mxu0 0.0
    %111 = vmatpush2.msra.mxu0 0.0
    %112 = vmatprep.subr.mxu0 0.0
    %113 = vmatpush2.msra.mxu0 0.0
    %114 = vmatprep.subr.mxu0 0.0
    %115 = vmatpush2.msra.mxu0 0.0
    %116 = vmatprep.mubr.f32.mxu0 0.0
    %117 = vmatmul.mubr.f32.gmra.mxu0 %v15
    %v118 = vpop.f32.mrf.mxu0
    %v119 = vadd.f32 0.0, %v118
    %v120 = vpop.f32.mrf.mxu0
    %v121 = vadd.f32 0.0, %v120
    %122 = vmatprep.mubr.f32.mxu0 0.0
    %123 = vmatmul.mubr.f32.gmra.mxu0 %v51
    %v124 = vpop.f32.mrf.mxu0
    %v125 = vadd.f32 0.0, %v124
    %v126 = vpop.f32.mrf.mxu0
    %127 = vdwg.mxu0
    %v128 = vxor.u32 %v121, 2147483648
    %v129 = vmul.f32 %v128, 1.442695
    %v130 = vpow.pop %v129
    %v131 = vadd.f32 %v130, 1.0
    %v132 = vrcp.pop %v131
    %v133 = vmul.f32 1.0, %v132
    %v134 = vmul.f32 %v125, 1.442695
    %v135 = vpow.pop %v134
    %v136 = vmul.f32 %v133, %v119
    %v137 = vsub.f32 1.0, %v133
    %v138 = vmul.f32 %v137, %v135
    %v139 = vadd.f32 %v136, %v138
    %v140 = vld [vmem:[%s2] sm:$0xff]
    %v141 = vld [vmem:[%s2 + $0x8] sm:$0xff]
    %v142 = vld [vmem:[%s2 + $0x10] sm:$0xff]
    %v143 = vld [vmem:[%s2 + $0x18] sm:$0xff]
    %v144 = vld [vmem:[%s2 + $0x20] sm:$0xff]
    %v145 = vld [vmem:[%s2 + $0x28] sm:$0xff]
    %v146 = vld [vmem:[%s2 + $0x30] sm:$0xff]
    %v147 = vld [vmem:[%s2 + $0x38] sm:$0xff]
    %v148 = vld [vmem:[%s2 + $0x40] sm:$0xff]
    %v149 = vld [vmem:[%s2 + $0x48] sm:$0xff]
    %v150 = vld [vmem:[%s2 + $0x50] sm:$0xff]
    %v151 = vld [vmem:[%s2 + $0x58] sm:$0xff]
    %v152 = vld [vmem:[%s2 + $0x60] sm:$0xff]
    %v153 = vld [vmem:[%s2 + $0x68] sm:$0xff]
    %v154 = vld [vmem:[%s2 + $0x70] sm:$0xff]
    %v155 = vld [vmem:[%s2 + $0x78] sm:$0xff]
    %v156 = vld [vmem:[%s2 + $0x80] sm:$0xff]
    %v157 = vld [vmem:[%s2 + $0x88] sm:$0xff]
    %v158 = vld [vmem:[%s2 + $0x90] sm:$0xff]
    %v159 = vld [vmem:[%s2 + $0x98] sm:$0xff]
    %v160 = vld [vmem:[%s2 + $0xa0] sm:$0xff]
    %v161 = vld [vmem:[%s2 + $0xa8] sm:$0xff]
    %v162 = vld [vmem:[%s2 + $0xb0] sm:$0xff]
    %v163 = vld [vmem:[%s2 + $0xb8] sm:$0xff]
    %v164 = vld [vmem:[%s2 + $0xc0] sm:$0xff]
    %v165 = vld [vmem:[%s2 + $0xc8] sm:$0xff]
    %v166 = vld [vmem:[%s2 + $0xd0] sm:$0xff]
    %v167 = vld [vmem:[%s2 + $0xd8] sm:$0xff]
    %v168 = vld [vmem:[%s2 + $0xe0] sm:$0xff]
    %v169 = vld [vmem:[%s2 + $0xe8] sm:$0xff]
    %v170 = vld [vmem:[%s2 + $0xf0] sm:$0xff]
    %v171 = vld [vmem:[%s2 + $0xf8] sm:$0xff]
    %v172 = vand.u32 2147483647, %v139
    %v173 = vadd.f32 %v172, 1e-10
    %v174 = vlog2.pop %v173
    %v175 = vmul.f32 %v174, 0.6931472
    %176 = vmatprep.subr.mxu0 %v171
    %177 = vmatpush1.msra.mxu0 %v170
    %178 = vmatprep.subr.mxu0 %v169
    %179 = vmatpush1.msra.mxu0 %v168
    %180 = vmatprep.subr.mxu0 %v167
    %181 = vmatpush1.msra.mxu0 %v166
    %182 = vmatprep.subr.mxu0 %v165
    %183 = vmatpush1.msra.mxu0 %v164
    %184 = vmatprep.subr.mxu0 %v163
    %185 = vmatpush1.msra.mxu0 %v162
    %186 = vmatprep.subr.mxu0 %v161
    %187 = vmatpush1.msra.mxu0 %v160
    %188 = vmatprep.subr.mxu0 %v159
    %189 = vmatpush1.msra.mxu0 %v158
    %190 = vmatprep.subr.mxu0 %v157
    %191 = vmatpush1.msra.mxu0 %v156
    %192 = vmatprep.subr.mxu0 %v155
    %193 = vmatpush1.msra.mxu0 %v154
    %194 = vmatprep.subr.mxu0 %v153
    %195 = vmatpush1.msra.mxu0 %v152
    %196 = vmatprep.subr.mxu0 %v151
    %197 = vmatpush1.msra.mxu0 %v150
    %198 = vmatprep.subr.mxu0 %v149
    %199 = vmatpush1.msra.mxu0 %v148
    %200 = vmatprep.subr.mxu0 %v147
    %201 = vmatpush1.msra.mxu0 %v146
    %202 = vmatprep.subr.mxu0 %v145
    %203 = vmatpush1.msra.mxu0 %v144
    %204 = vmatprep.subr.mxu0 %v143
    %205 = vmatpush1.msra.mxu0 %v142
    %206 = vmatprep.subr.mxu0 %v141
    %207 = vmatpush1.msra.mxu0 %v140
    %208 = vmatprep.subr.mxu0 0.0
    %209 = vmatpush2.msra.mxu0 0.0
    %210 = vmatprep.subr.mxu0 0.0
    %211 = vmatpush2.msra.mxu0 0.0
    %212 = vmatprep.subr.mxu0 0.0
    %213 = vmatpush2.msra.mxu0 0.0
    %214 = vmatprep.subr.mxu0 0.0
    %215 = vmatpush2.msra.mxu0 0.0
    %216 = vmatprep.subr.mxu0 0.0
    %217 = vmatpush2.msra.mxu0 0.0
    %218 = vmatprep.subr.mxu0 0.0
    %219 = vmatpush2.msra.mxu0 0.0
    %220 = vmatprep.subr.mxu0 0.0
    %221 = vmatpush2.msra.mxu0 0.0
    %222 = vmatprep.subr.mxu0 0.0
    %223 = vmatpush2.msra.mxu0 0.0
    %224 = vmatprep.subr.mxu0 0.0
    %225 = vmatpush2.msra.mxu0 0.0
    %226 = vmatprep.subr.mxu0 0.0
    %227 = vmatpush2.msra.mxu0 0.0
    %228 = vmatprep.subr.mxu0 0.0
    %229 = vmatpush2.msra.mxu0 0.0
    %230 = vmatprep.subr.mxu0 0.0
    %231 = vmatpush2.msra.mxu0 0.0
    %232 = vmatprep.subr.mxu0 0.0
    %233 = vmatpush2.msra.mxu0 0.0
    %234 = vmatprep.subr.mxu0 0.0
    %235 = vmatpush2.msra.mxu0 0.0
    %236 = vmatprep.subr.mxu0 0.0
    %237 = vmatpush2.msra.mxu0 0.0
    %238 = vmatprep.subr.mxu0 0.0
    %239 = vmatpush2.msra.mxu0 0.0
    %240 = vmatprep.mubr.f32.mxu0 0.0
    %241 = vmatmul.mubr.f32.gmra.mxu0 %v139
    %v242 = vpop.f32.mrf.mxu0
    %v243 = vadd.f32 0.0, %v242
    %v244 = vpop.f32.mrf.mxu0
    %v245 = vadd.f32 0.0, %v244
    %246 = vmatprep.mubr.f32.mxu0 0.0
    %247 = vmatmul.mubr.f32.gmra.mxu0 %v175
    %v248 = vpop.f32.mrf.mxu0
    %v249 = vadd.f32 0.0, %v248
    %v250 = vpop.f32.mrf.mxu0
    %251 = vdwg.mxu0
    %v252 = vxor.u32 %v245, 2147483648
    %v253 = vmul.f32 %v252, 1.442695
    %v254 = vpow.pop %v253
    %v255 = vadd.f32 %v254, 1.0
    %v256 = vrcp.pop %v255
    %v257 = vmul.f32 1.0, %v256
    %v258 = vmul.f32 %v249, 1.442695
    %v259 = vpow.pop %v258
    %v260 = vmul.f32 %v257, %v243
    %v261 = vsub.f32 1.0, %v257
    %v262 = vmul.f32 %v261, %v259
    %v263 = vadd.f32 %v260, %v262
    %264 = vst [vmem:[#allocation2] sm:$0xff] %v263
    // Predicated region
    $region14: #{nalu_forward.1} parent=1 // pred_check
      _
    $region15: #{nalu_forward.1} parent=1 // pred_check_branch
      %266 = sbr.rel (0) target = $region17
    $region16: #{nalu_forward.1} parent=1 // pred_region
      %s268 = ssub.s32 128, 128
      %269 = vsyncadd [#allocation3], %s268
      %s271 = sshll.u32 [#allocation2], 4
      %s272 = int_to_ptr.vmem [resolvable:$true] %s271
      %274 = dma.vmem_to_hbm [thread:$0]  %s272, 128, %s3, [#allocation3]
    $region17: #{nalu_forward.1} parent=1 // pred_fallthru
      _
    // Predicated region
    $region18: #{nalu_forward.1} parent=1 // pred_check
      _
    $region19: #{nalu_forward.1} parent=1 // pred_check_branch
      %276 = sbr.rel (0) target = $region21
    $region20: #{nalu_forward.1} parent=1 // pred_region
      %277 = dma.done [#allocation3], 128
    $region21: #{nalu_forward.1} parent=1 // pred_fallthru
      _
    %278 = vsyncpa [#allocation3], 1

</llo_original>
